<compile_context>
chip_gen: v7x
topology: tpu7x:2x2x1
jax: 0.10.0
libtpu: 0.0.40
codegen_flags: <defaults>
</compile_context>

<pallas_src>
from functools import partial

import numpy as np
import jax
import jax.numpy as jnp
from jax.experimental import pallas as pl
from jax.experimental.pallas import tpu as pltpu


# -----------------------------------------------------------------------------
# Init-time glue: quadratic B-spline basis synthesis (NumPy port of the
# reference bspline2_1ndsynth; runs once at module construction).
# -----------------------------------------------------------------------------
def bspline2_1ndsynth(num_kernels, nfe, dt, gam, ext):
    coeff = np.ones(num_kernels, dtype=np.float32)
    ti = np.linspace(0.0, num_kernels, nfe + ext).astype(np.float32)
    ti = np.maximum(ti, -1.5)
    ti = np.minimum(ti, num_kernels + 0.5)
    ti = ti + 2.0
    n0 = np.floor(ti - 0.5).astype(np.int64)

    def b2f0(t):
        return 0.75 - t ** 2

    def b2f1(t):
        return (np.abs(t) - 1.5) ** 2 / 2.0

    B = np.zeros((nfe + ext, num_kernels), dtype=np.float32)
    for i in range(num_kernels):
        coeff_i = np.zeros(num_kernels + 5, dtype=np.float32)
        coeff_i[i + 2] = coeff[i]
        ft = (coeff_i[n0] * b2f1(ti - n0)
              + coeff_i[n0 + 1] * b2f0(ti - (n0 + 1))
              + coeff_i[n0 + 2] * b2f1(ti - (n0 + 2)))
        B[:, i] = ft

    dB1 = B[ext // 2: nfe + ext // 2 - 1, :] - B[ext // 2 + 1: nfe + ext // 2, :]
    dB2 = dB1[:-1, :] - dB1[1:, :]
    b1ind = np.union1d(np.argmax(dB1, axis=0), np.argmin(dB1, axis=0))
    b2ind = np.union1d(np.argmax(dB2, axis=0), np.argmin(dB2, axis=0))
    dB1 = dB1[b1ind, :] / gam / dt
    dB2 = dB2[b2ind, :] / dt / gam / dt
    # returned transposed, exactly like the reference (.permute(1, 0))
    return (np.ascontiguousarray(B.T),      # [num_kernels, nfe + ext]
            np.ascontiguousarray(dB1.T),    # [num_kernels, n1]
            np.ascontiguousarray(dB2.T))    # [num_kernels, n2]


def make_fused_basis(B, dB1, dB2, *, nfe, ext, kmax):
    """Fuse [B_mid*scale | dB1 | dB2] along the lane axis, zero-padded to 128k."""
    num_kernels = B.shape[0]
    n1 = dB1.shape[1]
    n2 = dB2.shape[1]
    # slicing B before the matmul == slicing the matmul output; fold traj scale
    B_mid = B[:, ext // 2: nfe + ext // 2] * np.float32(2.0 * np.pi / kmax)
    total = nfe + n1 + n2
    n_pad = max(128, int(np.ceil(total / 128.0)) * 128)
    # Perf guard: for the default config (nfe=64, n1,n2<=32) total<=128 and the
    # output slab stays one 128-lane vreg column block.  If a config ever pushes
    # total past 128, prefer splitting dB2 into its own (tiny) matmul rather
    # than doubling the slab -- doubling the padded lanes doubles vst bundles
    # and HBM writeback purely for zeros.
    if total > 128:
        # TODO(synk): split dB2 off into a second lane-dense slab instead of
        # padding to 256 lanes if a non-default config ever hits this path.
        pass
    basis = np.zeros((num_kernels, n_pad), dtype=np.float32)
    basis[:, :nfe] = B_mid
    basis[:, nfe:nfe + n1] = dB1
    basis[:, nfe + n1:nfe + n1 + n2] = dB2
    return basis, n1, n2


# -----------------------------------------------------------------------------
# Pallas kernel: single fused matmul into one lane-dense output slab.
# -----------------------------------------------------------------------------
def _sampling_kernel(coeff_ref, basis_ref, out_ref):
    out_ref[...] = jnp.dot(coeff_ref[...], basis_ref[...],
                           preferred_element_type=jnp.float32
                           ).astype(out_ref.dtype)


@jax.custom_vjp
def _slab_matmul(coeff2d, basis):
    """(M, K) @ (K, n_pad) -> (M, n_pad) in one grid-less pallas_call."""
    M, K = coeff2d.shape
    n_pad = basis.shape[1]
    cost = pl.CostEstimate(
        flops=2 * M * K * n_pad,
        transcendentals=0,
        bytes_accessed=4 * (M * K + K * n_pad + M * n_pad),
    )
    return pl.pallas_call(
        _sampling_kernel,
        out_shape=jax.ShapeDtypeStruct((M, n_pad), coeff2d.dtype),
        in_specs=[
            pl.BlockSpec(memory_space=pltpu.MemorySpace.VMEM),
            pl.BlockSpec(memory_space=pltpu.MemorySpace.VMEM),
        ],
        out_specs=pl.BlockSpec(memory_space=pltpu.MemorySpace.VMEM),
        cost_estimate=cost,
    )(coeff2d, basis)


def _slab_matmul_fwd(coeff2d, basis):
    return _slab_matmul(coeff2d, basis), (coeff2d, basis)


def _slab_matmul_bwd(res, g):
    coeff2d, basis = res
    # Backward is the same overhead-bound shape; one plain XLA dot each is the
    # floor -- no need for a mirror Pallas kernel.
    dcoeff = jnp.dot(g, basis.T, preferred_element_type=jnp.float32
                     ).astype(coeff2d.dtype)
    dbasis = jnp.dot(coeff2d.T, g, preferred_element_type=jnp.float32
                     ).astype(basis.dtype)
    return dcoeff, dbasis


_slab_matmul.defvjp(_slab_matmul_fwd, _slab_matmul_bwd)


@partial(jax.jit, static_argnames=("nfe", "n1", "n2"))
def sampling_forward(coeff, basis, *, nfe, n1, n2):
    """Jitted Pallas implementation of SamplingLayerBspline2D.forward (decim>1).

    Under jit: the row-major reshapes are bitcasts, the three slab slices fuse
    into one small fusion, and the whole forward is a single launch.
    Note: multiple coeff sets (e.g. candidate trajectories) can be batched by
    stacking them into the M dimension of coeff2d -- rows are free up to the
    MXU row dimension (128 on v5e, 256 on v6e/v7x).
    """
    ndims, num_shots, num_kernels = coeff.shape
    M = ndims * num_shots
    coeff2d = coeff.reshape(M, num_kernels)                 # bitcast under jit

    out = _slab_matmul(coeff2d, basis)                      # (M, n_pad)

    traj = out[:, :nfe].reshape(ndims, num_shots * nfe)[None]   # [1, ndims, ns*nfe]
    grad = out[:, nfe:nfe + n1].reshape(ndims, num_shots, n1)   # [ndims, ns, n1]
    slew = out[:, nfe + n1:nfe + n1 + n2].reshape(ndims, num_shots, n2)
    return traj, grad, slew


# -----------------------------------------------------------------------------
# Main
# -----------------------------------------------------------------------------
if __name__ == "__main__":
    # module hyperparameters (small but consistent with the reference module)
    ndims = 2
    num_shots = 8
    nfe = 64
    decim = 4
    ext = 40
    gamma = 4257.6
    dt = 4e-06
    res = 0.1
    kmax = 1.0 / res
    num_kernels = nfe // decim

    # deterministic parameter init (stand-in for the np.load / lstsq fit)
    # TODO(synk): real module fits coeff to a trajectory file via lstsq at init.
    key = jax.random.PRNGKey(0)
    coeff = jax.random.normal(key, (ndims, num_shots, num_kernels),
                              dtype=jnp.float32)

    B_np, dB1_np, dB2_np = bspline2_1ndsynth(num_kernels, nfe, dt, gamma, ext)
    basis_np, n1, n2 = make_fused_basis(B_np, dB1_np, dB2_np,
                                        nfe=nfe, ext=ext, kmax=kmax)
    # default config must stay one 128-lane column block (perf guard)
    assert basis_np.shape[1] == 128, basis_np.shape
    basis = jnp.asarray(basis_np, dtype=jnp.float32)

    traj, grad, slew = sampling_forward(coeff, basis, nfe=nfe, n1=n1, n2=n2)
    jax.block_until_ready((traj, grad, slew))

    # pure-JAX reference (mirrors the PyTorch forward exactly)
    B = jnp.asarray(B_np, dtype=jnp.float32)
    dB1 = jnp.asarray(dB1_np, dtype=jnp.float32)
    dB2 = jnp.asarray(dB2_np, dtype=jnp.float32)
    traj_ref = jnp.matmul(coeff, B)[:, :, ext // 2: nfe + ext // 2]
    traj_ref = traj_ref.reshape(ndims, num_shots * nfe)[None] / kmax * 2.0 * np.pi
    grad_ref = jnp.matmul(coeff, dB1)
    slew_ref = jnp.matmul(coeff, dB2)

    np.testing.assert_allclose(np.asarray(traj), np.asarray(traj_ref),
                               rtol=1e-4, atol=1e-4)
    np.testing.assert_allclose(
        np.asarray(grad), np.asarray(grad_ref),
        rtol=1e-4, atol=1e-4 * float(jnp.max(jnp.abs(grad_ref))))
    np.testing.assert_allclose(
        np.asarray(slew), np.asarray(slew_ref),
        rtol=1e-4, atol=1e-4 * float(jnp.max(jnp.abs(slew_ref))))

    assert traj.shape == (1, ndims, num_shots * nfe)
    assert grad.shape == (ndims, num_shots, n1)
    assert slew.shape == (ndims, num_shots, n2)

    # gradient check: coeff is a trainable parameter in the reference module,
    # so the custom VJP around the Pallas call must match autodiff of the
    # pure-JAX reference.
    def loss_pallas(c):
        t, g, s = sampling_forward(c, basis, nfe=nfe, n1=n1, n2=n2)
        return jnp.sum(t) + jnp.sum(g) + jnp.sum(s)

    def loss_ref(c):
        t = jnp.matmul(c, B)[:, :, ext // 2: nfe + ext // 2]
        t = t.reshape(ndims, num_shots * nfe)[None] / kmax * 2.0 * np.pi
        return jnp.sum(t) + jnp.sum(jnp.matmul(c, dB1)) + jnp.sum(jnp.matmul(c, dB2))

    dcoeff = jax.block_until_ready(jax.grad(loss_pallas)(coeff))
    dcoeff_ref = jax.grad(loss_ref)(coeff)
    np.testing.assert_allclose(
        np.asarray(dcoeff), np.asarray(dcoeff_ref),
        rtol=1e-4, atol=1e-4 * float(jnp.max(jnp.abs(dcoeff_ref))))

    print("KERNEL_OK")
</pallas_src>

<mosaic_0001>
module attributes {stable_mosaic.version = 11 : i64} {
  func.func @_sampling_kernel(%arg0: memref<16x16xf32, #tpu.memory_space<vmem>>, %arg1: memref<16x128xf32, #tpu.memory_space<vmem>>, %arg2: memref<16x128xf32, #tpu.memory_space<vmem>>) attributes {dimension_semantics = [], scalar_prefetch = 0 : i64, scratch_operands = 0 : i64, tpu.core_type = #tpu.core_type<tc>} {
    %c0 = arith.constant 0 : index
    %c0_0 = arith.constant 0 : index
    %0 = vector.load %arg0[%c0, %c0_0] : memref<16x16xf32, #tpu.memory_space<vmem>>, vector<16x16xf32>
    %c0_1 = arith.constant 0 : index
    %c0_2 = arith.constant 0 : index
    %1 = vector.load %arg1[%c0_1, %c0_2] : memref<16x128xf32, #tpu.memory_space<vmem>>, vector<16x128xf32>
    %cst = arith.constant dense<0.000000e+00> : vector<16x128xf32>
    %2 = tpu.matmul %0, %1, %cst {dimension_numbers = #tpu.dot_dimension_numbers<[1], [0], [0], [1], [0, 0, 1, 1], [], []>} : vector<16x16xf32>, vector<16x128xf32>, vector<16x128xf32> -> vector<16x128xf32>
    %c0_3 = arith.constant 0 : index
    %c0_4 = arith.constant 0 : index
    %3 = vector.load %arg2[%c0_3, %c0_4] : memref<16x128xf32, #tpu.memory_space<vmem>>, vector<16x128xf32>
    tpu.vector_store %arg2[%c0_3, %c0_4], %2 {strides = array<i32>} : memref<16x128xf32, #tpu.memory_space<vmem>>, vector<16x128xf32>,
    return
  }
}

</mosaic_0001>

<llo_original>
// kernel: sampling_forward.1
$region0: #{sampling_forward.1}
  #allocation0 [shape = 'u32[]', space=smem, size = 0x4, offset = 0x4, fixed_abs, tag = 'smem constant byte address 0x4 - core index']
  #allocation1 [shape = 'u32[144,128]{1,0:T(1,128)}', space=vmem, size = 0x12000, scoped, tag = 'internal scratch']
  %s0 = inlined_call_operand.hbm [shape: f32[16,16], index: 0, kind: input, shape index: {}]
  %s1 = inlined_call_operand.hbm [shape: f32[16,128], index: 1, kind: input, shape index: {}]
  %s2 = inlined_call_operand.vmem [shape: f32[16,128], index: 2, kind: output, shape index: {}]
  %s3 = sld [smem:[#allocation0]]
  $region26: #{sampling_forward.1} parent=0
    _
  %s5 = ssub.s32 1, %s3
  %s6 = scalar_select 0, %s5, %s3
  $region1: #{sampling_forward.1} parent=0
    #allocation2 [shape = 'u8[8192]{0}', space=vmem, size = 0x2000, scoped, tag = 'input window, operand 0, single buffered']
    #allocation3 [shape = 's32[1]{0}', space=sflag, size = 0x4, scoped, tag = 'scoped memory for sampling_forward.1']
    #allocation4 [shape = 'u8[8192]{0}', space=vmem, size = 0x2000, scoped, tag = 'input window, operand 1, single buffered']
    #allocation5 [shape = 's32[1]{0}', space=sflag, size = 0x4, scoped, tag = 'scoped memory for sampling_forward.1']
    %7 = vsyncpa [#allocation3], 0
    %8 = vsyncpa [#allocation5], 0
    // Predicated region
    $region2: #{sampling_forward.1} parent=1 // pred_check
      _
    $region3: #{sampling_forward.1} parent=1 // pred_check_branch
      %10 = sbr.rel (0) target = $region5
    $region4: #{sampling_forward.1} parent=1 // pred_region
      %s12 = ssub.s32 256, 256
      %13 = vsyncadd [#allocation3], %s12
      %s14 = sshll.u32 [#allocation2], 4
      %s15 = int_to_ptr.vmem [resolvable:$true] %s14
      %20 = dma.hbm_to_vmem [thread:$0]  %s0, 256, %s15, [#allocation3], 128, 128, 8
    $region5: #{sampling_forward.1} parent=1 // pred_fallthru
      _
    // Predicated region
    $region6: #{sampling_forward.1} parent=1 // pred_check
      _
    $region7: #{sampling_forward.1} parent=1 // pred_check_branch
      %22 = sbr.rel (0) target = $region9
    $region8: #{sampling_forward.1} parent=1 // pred_region
      %s24 = ssub.s32 256, 256
      %25 = vsyncadd [#allocation5], %s24
      %s26 = sshll.u32 [#allocation4], 4
      %s27 = int_to_ptr.vmem [resolvable:$true] %s26
      %32 = dma.hbm_to_vmem [thread:$0]  %s1, 256, %s27, [#allocation5], 128, 128, 8
    $region9: #{sampling_forward.1} parent=1 // pred_fallthru
      _
    // Predicated region
    $region10: #{sampling_forward.1} parent=1 // pred_check
      _
    $region11: #{sampling_forward.1} parent=1 // pred_check_branch
      %34 = sbr.rel (0) target = $region13
    $region12: #{sampling_forward.1} parent=1 // pred_region
      %35 = dma.done [#allocation3], 256
    $region13: #{sampling_forward.1} parent=1 // pred_fallthru
      _
    // Predicated region
    $region14: #{sampling_forward.1} parent=1 // pred_check
      _
    $region15: #{sampling_forward.1} parent=1 // pred_check_branch
      %37 = sbr.rel (0) target = $region17
    $region16: #{sampling_forward.1} parent=1 // pred_region
      %38 = dma.done [#allocation5], 256
    $region17: #{sampling_forward.1} parent=1 // pred_fallthru
      _
    %v39 = vld [vmem:[#allocation2] sm:$0xff]
    %v40 = vld [vmem:[#allocation2 + $0x8] sm:$0xff]
    %v41 = vld [vmem:[#allocation4] sm:$0xff]
    %v42 = vld [vmem:[#allocation4 + $0x8] sm:$0xff]
    %vm43 = vcmask 130048
    %v45 = vsel %vm43, %v39, 0
    %v48 = vsel %vm43, %v40, 0
    %50 = vmatprep.subr.mxu0 0.0
    %51 = vmatpush1.msra.mxu0 %v41
    %52 = vmatprep.subr.mxu0 0.0
    %53 = vmatpush1.msra.mxu0 %v42
    %54 = vmatprep.subr.mxu0 0.0
    %55 = vmatpush1.msra.mxu0 0.0
    %56 = vmatprep.subr.mxu0 0.0
    %57 = vmatpush1.msra.mxu0 0.0
    %58 = vmatprep.subr.mxu0 0.0
    %59 = vmatpush1.msra.mxu0 0.0
    %60 = vmatprep.subr.mxu0 0.0
    %61 = vmatpush1.msra.mxu0 0.0
    %62 = vmatprep.subr.mxu0 0.0
    %63 = vmatpush1.msra.mxu0 0.0
    %64 = vmatprep.subr.mxu0 0.0
    %65 = vmatpush1.msra.mxu0 0.0
    %66 = vmatprep.subr.mxu0 0.0
    %67 = vmatpush1.msra.mxu0 0.0
    %68 = vmatprep.subr.mxu0 0.0
    %69 = vmatpush1.msra.mxu0 0.0
    %70 = vmatprep.subr.mxu0 0.0
    %71 = vmatpush1.msra.mxu0 0.0
    %72 = vmatprep.subr.mxu0 0.0
    %73 = vmatpush1.msra.mxu0 0.0
    %74 = vmatprep.subr.mxu0 0.0
    %75 = vmatpush1.msra.mxu0 0.0
    %76 = vmatprep.subr.mxu0 0.0
    %77 = vmatpush1.msra.mxu0 0.0
    %78 = vmatprep.subr.mxu0 0.0
    %79 = vmatpush1.msra.mxu0 0.0
    %80 = vmatprep.subr.mxu0 0.0
    %81 = vmatpush1.msra.mxu0 0.0
    %82 = vmatprep.subr.mxu0 0.0
    %83 = vmatpush1.msra.mxu0 0.0
    %84 = vmatprep.subr.mxu0 0.0
    %85 = vmatpush1.msra.mxu0 0.0
    %86 = vmatprep.subr.mxu0 0.0
    %87 = vmatpush1.msra.mxu0 0.0
    %88 = vmatprep.subr.mxu0 0.0
    %89 = vmatpush1.msra.mxu0 0.0
    %90 = vmatprep.subr.mxu0 0.0
    %91 = vmatpush1.msra.mxu0 0.0
    %92 = vmatprep.subr.mxu0 0.0
    %93 = vmatpush1.msra.mxu0 0.0
    %94 = vmatprep.subr.mxu0 0.0
    %95 = vmatpush1.msra.mxu0 0.0
    %96 = vmatprep.subr.mxu0 0.0
    %97 = vmatpush1.msra.mxu0 0.0
    %98 = vmatprep.subr.mxu0 0.0
    %99 = vmatpush1.msra.mxu0 0.0
    %100 = vmatprep.subr.mxu0 0.0
    %101 = vmatpush1.msra.mxu0 0.0
    %102 = vmatprep.subr.mxu0 0.0
    %103 = vmatpush1.msra.mxu0 0.0
    %104 = vmatprep.subr.mxu0 0.0
    %105 = vmatpush1.msra.mxu0 0.0
    %106 = vmatprep.subr.mxu0 0.0
    %107 = vmatpush1.msra.mxu0 0.0
    %108 = vmatprep.subr.mxu0 0.0
    %109 = vmatpush1.msra.mxu0 0.0
    %110 = vmatprep.subr.mxu0 0.0
    %111 = vmatpush1.msra.mxu0 0.0
    %112 = vmatprep.subr.mxu0 0.0
    %113 = vmatpush1.msra.mxu0 0.0
    %114 = vmatprep.mubr.f32.mxu0 0.0
    %115 = vmatmul.mubr.f32.gmra.mrb[0].mxu0 %v45
    %v116 = vpop.f32.mrb[0].mxu0
    %v117 = vadd.f32 0.0, %v116
    %v118 = vpop.f32.mrb[0].mxu0
    %119 = vmatprep.mubr.f32.mxu0 0.0
    %120 = vmatmul.mubr.f32.gmra.mrb[0].mxu0 %v48
    %v121 = vpop.f32.mrb[0].mxu0
    %v122 = vadd.f32 0.0, %v121
    %v123 = vpop.f32.mrb[0].mxu0
    %124 = vdwg.mxu0
    %125 = vst [vmem:[%s2] sm:$0xff] %v117
    %126 = vst [vmem:[%s2 + $0x8] sm:$0xff] %v122
    // Predicated region
    $region18: #{sampling_forward.1} parent=1 // pred_check
      _
    $region19: #{sampling_forward.1} parent=1 // pred_check_branch
      %128 = sbr.rel (0) target = $region21
    $region20: #{sampling_forward.1} parent=1 // pred_region
      _
    $region21: #{sampling_forward.1} parent=1 // pred_fallthru
      _
    // Predicated region
    $region22: #{sampling_forward.1} parent=1 // pred_check
      _
    $region23: #{sampling_forward.1} parent=1 // pred_check_branch
      %130 = sbr.rel (0) target = $region25
    $region24: #{sampling_forward.1} parent=1 // pred_region
      _
    $region25: #{sampling_forward.1} parent=1 // pred_fallthru
      _
    %131 = vsyncpa [#allocation3], 1
    %132 = vsyncpa [#allocation5], 1

</llo_original>
